<compile_context>
chip_gen: v5e
topology: v5e:2x2
jax: 0.10.0
libtpu: 0.0.40
codegen_flags: <defaults>
</compile_context>

<pallas_src>
import functools

import jax
import jax.numpy as jnp
from jax import lax
from jax.experimental import pallas as pl
from jax.experimental.pallas import tpu as pltpu

LANES = 128
MAX_TILE = 32 * 1024      # lanes (elements) per grid step; multiple of 128
NUM_CORES = 2             # leading "parallel" axis (megacore on v7x, harmless elsewhere)


def _contrastive_loss_kernel(d_ref, l_ref, o_ref, acc_ref, *, margin, n_valid, tile):
    c = pl.program_id(0)        # "parallel" (core) axis
    i = pl.program_id(1)        # "arbitrary" (reduction) axis
    steps = pl.num_programs(1)

    @pl.when(i == 0)
    def _init():
        acc_ref[...] = jnp.zeros_like(acc_ref)

    # In-kernel cast (free VPU work); inputs keep their caller dtype in HBM.
    d = d_ref[...].astype(jnp.float32)
    lab = l_ref[...].astype(jnp.float32)

    # (1 - label) * d^2 + label * relu(margin - d)^2   — pure VPU elementwise.
    hinge = jnp.maximum(margin - d, 0.0)
    per_elem = (1.0 - lab) * d * d + lab * hinge * hinge

    # Mask the ragged tail (and fully out-of-range tiles on the second core).
    # `blk` is the *un-clamped* block index, so re-read clamped blocks mask to 0.
    blk = c * steps + i
    offset = blk * tile                                     # int32; fine for B < 2^31
    idx = offset + lax.broadcasted_iota(jnp.int32, d.shape, 1)
    per_elem = jnp.where(idx < n_valid, per_elem, 0.0)

    # Per-tile accumulation is VPU-only; the cross-lane reduce is deferred.
    acc_ref[...] += per_elem

    @pl.when(i == steps - 1)
    def _finalize():
        s = jnp.sum(acc_ref[...], axis=1, keepdims=True)    # (1, 1): one XLU reduce
        o_ref[...] = jnp.broadcast_to(s * (1.0 / float(n_valid)), o_ref.shape)


def contrastive_loss(distance, label, margin=1.0, *, max_tile=MAX_TILE):
    """Pallas TPU implementation of ContrastiveLoss.forward(distance, label)."""
    assert distance.shape == label.shape
    assert max_tile % LANES == 0
    n = int(distance.size)

    # Free reshapes — no host-side padding, no host-side dtype casts.
    d2 = distance.reshape(1, -1)
    l2 = label.reshape(1, -1)

    # Either the block covers the full lane dim (allowed for any size), or it is
    # a multiple of 128 and the ragged edge block is masked in-kernel.
    tile = n if n <= max_tile else max_tile
    n_blocks = -(-n // tile)
    steps_per_core = -(-n_blocks // NUM_CORES)

    def data_map(c, i):
        # Clamp so the trailing core never issues a DMA fully outside the array;
        # the kernel's un-clamped index mask zeroes any re-read block.
        return (0, jnp.minimum(c * steps_per_core + i, n_blocks - 1))

    kernel = functools.partial(
        _contrastive_loss_kernel, margin=float(margin), n_valid=n, tile=tile)

    out = pl.pallas_call(
        kernel,
        out_shape=jax.ShapeDtypeStruct((1, NUM_CORES * LANES), jnp.float32),
        grid_spec=pltpu.PrefetchScalarGridSpec(
            num_scalar_prefetch=0,
            grid=(NUM_CORES, steps_per_core),
            in_specs=[
                pl.BlockSpec((1, tile), data_map),
                pl.BlockSpec((1, tile), data_map),
            ],
            out_specs=pl.BlockSpec((1, LANES), lambda c, i: (0, c)),
            scratch_shapes=[pltpu.VMEM((1, tile), jnp.float32)],
        ),
        compiler_params=pltpu.CompilerParams(
            dimension_semantics=("parallel", "arbitrary"),
            vmem_limit_bytes=32 * 1024 * 1024,
        ),
    )(d2, l2)

    # One lane-dense partial per core; sum them (each already divided by n).
    return out[0, 0] + out[0, LANES]


def _reference_contrastive_loss(distance, label, margin=1.0):
    d = distance.astype(jnp.float32)
    lab = label.astype(jnp.float32)
    hinge = jnp.maximum(margin - d, 0.0)
    return jnp.mean((1.0 - lab) * d * d + lab * hinge * hinge)


if __name__ == "__main__":
    key = jax.random.PRNGKey(0)
    k_d, k_l, k_d2, k_l2 = jax.random.split(key, 4)

    # Case 1: small batch, f32 distance + f32 label (matches the PyTorch module).
    batch = 8
    distance = jax.random.uniform(k_d, (batch,), dtype=jnp.float32) * 2.0
    label = jax.random.bernoulli(k_l, 0.5, (batch,)).astype(jnp.float32)

    loss = contrastive_loss(distance, label, margin=1.0)
    loss = jax.block_until_ready(loss)
    ref = _reference_contrastive_loss(distance, label, margin=1.0)
    assert jnp.allclose(loss, ref, atol=1e-6, rtol=1e-5), (loss, ref)

    # Case 2: exercise the tiled / ragged-tail / multi-core-split path at a small
    # size (max_tile=256 => 4 blocks, partial edge block, clamped trailing core)
    # with a bf16 label to check the native-dtype pass-through.
    batch2 = 1000
    distance2 = jax.random.uniform(k_d2, (batch2,), dtype=jnp.float32) * 2.0
    label2 = jax.random.bernoulli(k_l2, 0.5, (batch2,)).astype(jnp.bfloat16)

    loss2 = contrastive_loss(distance2, label2, margin=1.0, max_tile=256)
    loss2 = jax.block_until_ready(loss2)
    ref2 = _reference_contrastive_loss(distance2, label2, margin=1.0)
    assert jnp.allclose(loss2, ref2, atol=1e-6, rtol=1e-5), (loss2, ref2)

    print("KERNEL_OK")
</pallas_src>

<mosaic_0001>
module attributes {stable_mosaic.version = 11 : i64} {
  func.func @_contrastive_loss_kernel(%arg0: i32, %arg1: i32, %arg2: memref<1x8xf32, #tpu.memory_space<vmem>>, %arg3: memref<1x8xf32, #tpu.memory_space<vmem>>, %arg4: memref<1x128xf32, #tpu.memory_space<vmem>>, %arg5: memref<1x8xf32, #tpu.memory_space<vmem>>) attributes {dimension_semantics = [#tpu.dimension_semantics<parallel>, #tpu.dimension_semantics<arbitrary>], iteration_bounds = array<i64: 2, 1>, scalar_prefetch = 0 : i64, scratch_operands = 1 : i64, tpu.core_type = #tpu.core_type<tc>, window_params = [{transform_indices = @transform_0, window_bounds = array<i64: 1, 8>}, {transform_indices = @transform_1, window_bounds = array<i64: 1, 8>}, {transform_indices = @transform_2, window_bounds = array<i64: 1, 128>}]} {
    %c0_i32 = arith.constant 0 : i32
    %0 = arith.cmpi eq, %arg1, %c0_i32 : i32
    %1 = arith.extui %0 : i1 to i32
    %c0_i32_0 = arith.constant 0 : i32
    %2 = arith.cmpi ne, %1, %c0_i32_0 : i32
    scf.if %2 {
      %cst_14 = arith.constant 0.000000e+00 : f32
      %32 = vector.broadcast %cst_14 : f32 to vector<1x8xf32>
      %c0_15 = arith.constant 0 : index
      %c0_16 = arith.constant 0 : index
      %33 = vector.load %arg5[%c0_15, %c0_16] : memref<1x8xf32, #tpu.memory_space<vmem>>, vector<1x8xf32>
      tpu.vector_store %arg5[%c0_15, %c0_16], %32 {strides = array<i32>} : memref<1x8xf32, #tpu.memory_space<vmem>>, vector<1x8xf32>,
    } else {
    }
    %c0 = arith.constant 0 : index
    %c0_1 = arith.constant 0 : index
    %3 = vector.load %arg2[%c0, %c0_1] : memref<1x8xf32, #tpu.memory_space<vmem>>, vector<1x8xf32>
    %c0_2 = arith.constant 0 : index
    %c0_3 = arith.constant 0 : index
    %4 = vector.load %arg3[%c0_2, %c0_3] : memref<1x8xf32, #tpu.memory_space<vmem>>, vector<1x8xf32>
    %cst = arith.constant 1.000000e+00 : f32
    %5 = vector.broadcast %cst : f32 to vector<1x8xf32>
    %6 = arith.subf %5, %3 : vector<1x8xf32>
    %cst_4 = arith.constant 0.000000e+00 : f32
    %7 = vector.broadcast %cst_4 : f32 to vector<1x8xf32>
    %8 = arith.maximumf %6, %7 : vector<1x8xf32>
    %cst_5 = arith.constant 1.000000e+00 : f32
    %9 = vector.broadcast %cst_5 : f32 to vector<1x8xf32>
    %10 = arith.subf %9, %4 : vector<1x8xf32>
    %11 = arith.mulf %10, %3 : vector<1x8xf32>
    %12 = arith.mulf %11, %3 : vector<1x8xf32>
    %13 = arith.mulf %4, %8 : vector<1x8xf32>
    %14 = arith.mulf %13, %8 : vector<1x8xf32>
    %15 = arith.addf %12, %14 : vector<1x8xf32>
    %c1_i32 = arith.constant 1 : i32
    %16 = arith.muli %arg0, %c1_i32 : i32
    %17 = arith.addi %16, %arg1 : i32
    %c8_i32 = arith.constant 8 : i32
    %18 = arith.muli %17, %c8_i32 : i32
    %19 = tpu.iota {dimensions = array<i32: 1>} : vector<1x8xi32>
    %20 = vector.broadcast %18 : i32 to vector<1x8xi32>
    %21 = arith.addi %20, %19 : vector<1x8xi32>
    %c8_i32_6 = arith.constant 8 : i32
    %22 = vector.broadcast %c8_i32_6 : i32 to vector<1x8xi32>
    %23 = arith.cmpi slt, %21, %22 : vector<1x8xi32>
    %cst_7 = arith.constant 0.000000e+00 : f32
    %24 = vector.broadcast %cst_7 : f32 to vector<1x8xf32>
    %25 = arith.select %23, %15, %24 : vector<1x8xi1>, vector<1x8xf32>
    %c0_8 = arith.constant 0 : index
    %c0_9 = arith.constant 0 : index
    %26 = vector.load %arg5[%c0_8, %c0_9] : memref<1x8xf32, #tpu.memory_space<vmem>>, vector<1x8xf32>
    %27 = arith.addf %26, %25 : vector<1x8xf32>
    %c0_10 = arith.constant 0 : index
    %c0_11 = arith.constant 0 : index
    %28 = vector.load %arg5[%c0_10, %c0_11] : memref<1x8xf32, #tpu.memory_space<vmem>>, vector<1x8xf32>
    tpu.vector_store %arg5[%c0_10, %c0_11], %27 {strides = array<i32>} : memref<1x8xf32, #tpu.memory_space<vmem>>, vector<1x8xf32>,
    %c0_i32_12 = arith.constant 0 : i32
    %29 = arith.cmpi eq, %arg1, %c0_i32_12 : i32
    %30 = arith.extui %29 : i1 to i32
    %c0_i32_13 = arith.constant 0 : i32
    %31 = arith.cmpi ne, %30, %c0_i32_13 : i32
    scf.if %31 {
      %c0_14 = arith.constant 0 : index
      %c0_15 = arith.constant 0 : index
      %32 = vector.load %arg5[%c0_14, %c0_15] : memref<1x8xf32, #tpu.memory_space<vmem>>, vector<1x8xf32>
      %cst_16 = arith.constant dense<0.000000e+00> : vector<1xf32>
      %33 = vector.multi_reduction <add>, %32, %cst_16 [1] : vector<1x8xf32> to vector<1xf32>
      %34 = vector.shape_cast %33 : vector<1xf32> to vector<1x1xf32>
      %cst_17 = arith.constant 1.250000e-01 : f32
      %35 = vector.broadcast %cst_17 : f32 to vector<1x1xf32>
      %36 = arith.mulf %34, %35 : vector<1x1xf32>
      %37 = vector.shape_cast %36 : vector<1x1xf32> to vector<1x1xf32>
      %38 = vector.broadcast %37 : vector<1x1xf32> to vector<1x128xf32>
      %c0_18 = arith.constant 0 : index
      %c0_19 = arith.constant 0 : index
      %39 = vector.load %arg4[%c0_18, %c0_19] : memref<1x128xf32, #tpu.memory_space<vmem>>, vector<1x128xf32>
      tpu.vector_store %arg4[%c0_18, %c0_19], %38 {strides = array<i32>} : memref<1x128xf32, #tpu.memory_space<vmem>>, vector<1x128xf32>,
    } else {
    }
    return
  }
  func.func @transform_0(%arg0: i32, %arg1: i32) -> (i32, i32) {
    %c1_i32 = arith.constant 1 : i32
    %0 = arith.muli %arg0, %c1_i32 : i32
    %1 = arith.addi %0, %arg1 : i32
    %c0_i32 = arith.constant 0 : i32
    %2 = arith.minsi %1, %c0_i32 : i32
    %c0_i32_0 = arith.constant 0 : i32
    %c0_i32_1 = arith.constant 0 : i32
    return %c0_i32_0, %2 : i32, i32
  }
  func.func @transform_1(%arg0: i32, %arg1: i32) -> (i32, i32) {
    %c1_i32 = arith.constant 1 : i32
    %0 = arith.muli %arg0, %c1_i32 : i32
    %1 = arith.addi %0, %arg1 : i32
    %c0_i32 = arith.constant 0 : i32
    %2 = arith.minsi %1, %c0_i32 : i32
    %c0_i32_0 = arith.constant 0 : i32
    %c0_i32_1 = arith.constant 0 : i32
    return %c0_i32_0, %2 : i32, i32
  }
  func.func @transform_2(%arg0: i32, %arg1: i32) -> (i32, i32) {
    %c0_i32 = arith.constant 0 : i32
    %c0_i32_0 = arith.constant 0 : i32
    return %c0_i32, %arg0 : i32, i32
  }
}

</mosaic_0001>

<llo_original>
// kernel: tpu_custom_call.1
$region0: #{tpu_custom_call.1}
  #allocation0 [shape = 'u32[]', space=smem, size = 0x4, offset = 0x4, fixed_abs, tag = 'smem constant byte address 0x4 - core index']
  #allocation1 [shape = 'u32[72,128]{1,0:T(1,128)}', space=vmem, size = 0x9000, scoped, tag = 'internal scratch']
  #allocation2 [shape = 'f32[1,8]{1,0:T(1,128)}', space=vmem, size = 0x200, scoped, tag = 'scratch operand']
  %s0 = inlined_call_operand.hbm [shape: f32[1,8], index: 0, kind: input, shape index: {}]
  %s1 = inlined_call_operand.hbm [shape: f32[1,8], index: 1, kind: input, shape index: {}]
  %s2 = inlined_call_operand.hbm [shape: f32[1,256], index: 2, kind: output, shape index: {}]
  %s3 = sld [smem:[#allocation0]]
  $region57: #{tpu_custom_call.1} parent=0
    _
  %s5 = ssub.s32 1, %s3
  %s6 = scalar_select 0, %s5, %s3
  $region1: #{tpu_custom_call.1} parent=0
    #allocation3 [shape = 'u8[1024]{0}', space=vmem, size = 0x400, scoped, tag = 'input window, operand 0']
    #allocation4 [shape = 's32[2]{0}', space=sflag, size = 0x8, scoped, tag = 'scoped memory for tpu_custom_call.1']
    #allocation5 [shape = 's32[2]{0}', space=sflag, size = 0x8, scoped, tag = 'scoped memory for tpu_custom_call.1']
    #allocation6 [shape = 'u8[1024]{0}', space=vmem, size = 0x400, scoped, tag = 'input window, operand 1']
    #allocation7 [shape = 's32[2]{0}', space=sflag, size = 0x8, scoped, tag = 'scoped memory for tpu_custom_call.1']
    #allocation8 [shape = 'u8[1024]{0}', space=vmem, size = 0x400, scoped, tag = 'output window, operand 0']
    %7 = vsyncpa [#allocation4], 0
    %s8 = scalar_lea.sflag [#allocation4], 1
    %9 = vsyncpa %s8, 0
    %10 = vsyncpa [#allocation7], 0
    %s11 = scalar_lea.sflag [#allocation7], 1
    %12 = vsyncpa %s11, 0
    %13 = vsyncpa [#allocation5], 0
    %s14 = scalar_lea.sflag [#allocation5], 1
    %15 = vsyncpa %s14, 0
    loop: start=0, step=1, limit=4
    $region2: #{tpu_custom_call.1} parent=1 // loop_pre_header
      _
    $region3: #{tpu_custom_call.1} parent=1 // loop_header
      %s17 = sphi 0, %s21
      %p18 = scmp.ge.s32.totalorder %s17, 4
      %s24 = sphi 0, %s36
      %s25 = sphi 0, %s32
      %s26 = sphi 0, %s24
      %s27 = sphi 0, %s25
      %s28 = sphi 0, %s26
      %s29 = sphi 0, %s27
      %s45 = sphi 0, %s47
      %s48 = sphi 0, %s45
      %s49 = sphi 0, %s48
      %s65 = sphi 0, %s49
      %s77 = sphi 0, %s79
      %s80 = sphi 0, %s77
      %s81 = sphi 0, %s80
      %s97 = sphi 0, %s81
      %s103 = sphi 0, %s105
      %s106 = sphi 0, %s103
      %s107 = sphi 0, %s106
      %s123 = sphi 0, %s107
    $region4: #{tpu_custom_call.1} parent=1 // loop_header_branch
      %20 = sbr.rel (%p18) target = $region8
    $region5: #{tpu_custom_call.1} parent=1 // loop_body
      %s22 = ssub.s32 %s17, 1
      %s23 = ssub.s32 %s17, 2
      %s30 = sadd.s32 1, %s25
      %p31 = scmp.ge.s32.totalorder %s30, 1
      %s32 = scalar_select %p31, 0, %s30
      %s33 = sadd.s32 1, %s24
      %s34 = scalar_select %p31, %s33, %s24
      %p35 = scmp.ge.s32.totalorder %s34, 2
      %s36 = scalar_select %p35, 0, %s34
      %s37 = sadd.s32 %s24, %s25
      %p38 = scmp.lt.s32.totalorder %s37, 0
      %s39 = scalar_select %p38, %s37, 0
      %s40 = sadd.s32 %s36, %s32
      %p41 = scmp.lt.s32.totalorder %s40, 0
      %s42 = scalar_select %p41, %s40, 0
      %s43 = ssub.s32 %s39, %s42
      %p44 = scmp.eq.s32.totalorder %s43, 0
      %s46 = sadd.s32 %s45, 1
      %s47 = scalar_select %p44, %s45, %s46
      %p50 = pneg %p44
      %p51 = scmp.eq.s32.totalorder %s17, 1
      %p52 = por %p50, %p51
      %p53 = scmp.ne.s32.totalorder %s45, %s48
      %p54 = scmp.eq.s32.totalorder %s17, 0
      %p55 = por %p53, %p54
      %p56 = scmp.ne.s32.totalorder %s45, %s48
      %p57 = scmp.eq.s32.totalorder %s22, 1
      %p58 = por %p56, %p57
      %p59 = scmp.ne.s32.totalorder %s48, %s49
      %p60 = scmp.eq.s32.totalorder %s22, 0
      %p61 = por %p59, %p60
      %p62 = scmp.ne.s32.totalorder %s48, %s49
      %p63 = scmp.eq.s32.totalorder %s23, 1
      %p64 = por %p62, %p63
      %p66 = scmp.ne.s32.totalorder %s49, %s65
      %p67 = scmp.eq.s32.totalorder %s23, 0
      %p68 = por %p66, %p67
      %s69 = sadd.s32 %s24, %s25
      %p70 = scmp.lt.s32.totalorder %s69, 0
      %s71 = scalar_select %p70, %s69, 0
      %s72 = sadd.s32 %s36, %s32
      %p73 = scmp.lt.s32.totalorder %s72, 0
      %s74 = scalar_select %p73, %s72, 0
      %s75 = ssub.s32 %s71, %s74
      %p76 = scmp.eq.s32.totalorder %s75, 0
      %s78 = sadd.s32 %s77, 1
      %s79 = scalar_select %p76, %s77, %s78
      %p82 = pneg %p76
      %p83 = scmp.eq.s32.totalorder %s17, 1
      %p84 = por %p82, %p83
      %p85 = scmp.ne.s32.totalorder %s77, %s80
      %p86 = scmp.eq.s32.totalorder %s17, 0
      %p87 = por %p85, %p86
      %p88 = scmp.ne.s32.totalorder %s77, %s80
      %p89 = scmp.eq.s32.totalorder %s22, 1
      %p90 = por %p88, %p89
      %p91 = scmp.ne.s32.totalorder %s80, %s81
      %p92 = scmp.eq.s32.totalorder %s22, 0
      %p93 = por %p91, %p92
      %p94 = scmp.ne.s32.totalorder %s80, %s81
      %p95 = scmp.eq.s32.totalorder %s23, 1
      %p96 = por %p94, %p95
      %p98 = scmp.ne.s32.totalorder %s81, %s97
      %p99 = scmp.eq.s32.totalorder %s23, 0
      %p100 = por %p98, %p99
      %s101 = ssub.s32 %s24, %s36
      %p102 = scmp.eq.s32.totalorder %s101, 0
      %s104 = sadd.s32 %s103, 1
      %s105 = scalar_select %p102, %s103, %s104
      %p108 = pneg %p102
      %p109 = scmp.eq.s32.totalorder %s17, 1
      %p110 = por %p108, %p109
      %p111 = scmp.ne.s32.totalorder %s103, %s106
      %p112 = scmp.eq.s32.totalorder %s17, 0
      %p113 = por %p111, %p112
      %p114 = scmp.ne.s32.totalorder %s103, %s106
      %p115 = scmp.eq.s32.totalorder %s22, 1
      %p116 = por %p114, %p115
      %p117 = scmp.ne.s32.totalorder %s106, %s107
      %p118 = scmp.eq.s32.totalorder %s22, 0
      %p119 = por %p117, %p118
      %p120 = scmp.ne.s32.totalorder %s106, %s107
      %p121 = scmp.eq.s32.totalorder %s23, 1
      %p122 = por %p120, %p121
      %p124 = scmp.ne.s32.totalorder %s107, %s123
      %p125 = scmp.eq.s32.totalorder %s23, 0
      %p126 = por %p124, %p125
      %p127 = scmp.le.s32.totalorder 1, %s17
      %p128 = scmp.lt.s32.totalorder %s17, 3
      %p129 = pnand %p127, %p128
      %p130 = pneg %p129
      // Predicated region
      $region9: #{tpu_custom_call.1} parent=5 // pred_check
        _
      $region10: #{tpu_custom_call.1} parent=5 // pred_check_branch
        %132 = sbr.rel (%p129) target = $region12
      $region11: #{tpu_custom_call.1} parent=5 // pred_region
        %s133 = ssub.s32 %s17, 1
      $region12: #{tpu_custom_call.1} parent=5 // pred_fallthru
        _
      %p134 = scmp.lt.s32.totalorder %s17, 2
      // Predicated region
      $region13: #{tpu_custom_call.1} parent=5 // pred_check
        %p135 = pneg %p134
      $region14: #{tpu_custom_call.1} parent=5 // pred_check_branch
        %137 = sbr.rel (%p135) target = $region16
      $region15: #{tpu_custom_call.1} parent=5 // pred_region
        // Predicated region
        $region17: #{tpu_custom_call.1} parent=15 // pred_check
          %p138 = pneg %p55
        $region18: #{tpu_custom_call.1} parent=15 // pred_check_branch
          %140 = sbr.rel (%p138) target = $region20
        $region19: #{tpu_custom_call.1} parent=15 // pred_region
          %s141 = sand.u32 %s45, 1
          %s142 = scalar_lea.sflag [#allocation4], %s141
          %s143 = sand.u32 %s45, 1
          %s144 = scalar_lea.vmem [#allocation3], %s143
          %s145 = sadd.s32 %s24, %s25
          %p146 = scmp.lt.s32.totalorder %s145, 0
          %s147 = scalar_select %p146, %s145, 0
          %149 = vsyncadd %s142, 0
          %s150 = scalar_lea.hbm %s0, %s147
          %s152 = sshll.u32 %s150, 4
          %s153 = int_to_ptr.hbm [resolvable:$true] %s152
          %s154 = sshll.u32 %s144, 4
          %s155 = int_to_ptr.vmem [resolvable:$true] %s154
          %157 = dma.hbm_to_vmem [thread:$0]  %s153, 16, %s155, %s142
        $region20: #{tpu_custom_call.1} parent=15 // pred_fallthru
          _
        // Predicated region
        $region21: #{tpu_custom_call.1} parent=15 // pred_check
          %p158 = pneg %p87
        $region22: #{tpu_custom_call.1} parent=15 // pred_check_branch
          %160 = sbr.rel (%p158) target = $region24
        $region23: #{tpu_custom_call.1} parent=15 // pred_region
          %s161 = sand.u32 %s77, 1
          %s162 = scalar_lea.sflag [#allocation7], %s161
          %s163 = sand.u32 %s77, 1
          %s164 = scalar_lea.vmem [#allocation6], %s163
          %s165 = sadd.s32 %s24, %s25
          %p166 = scmp.lt.s32.totalorder %s165, 0
          %s167 = scalar_select %p166, %s165, 0
          %169 = vsyncadd %s162, 0
          %s170 = scalar_lea.hbm %s1, %s167
          %s172 = sshll.u32 %s170, 4
          %s173 = int_to_ptr.hbm [resolvable:$true] %s172
          %s174 = sshll.u32 %s164, 4
          %s175 = int_to_ptr.vmem [resolvable:$true] %s174
          %177 = dma.hbm_to_vmem [thread:$0]  %s173, 16, %s175, %s162
        $region24: #{tpu_custom_call.1} parent=15 // pred_fallthru
          _
      $region16: #{tpu_custom_call.1} parent=5 // pred_fallthru
        _
      %p178 = scmp.le.s32.totalorder 1, %s17
      %p179 = scmp.lt.s32.totalorder %s17, 3
      %p180 = pnand %p178, %p179
      %p181 = pneg %p180
      // Predicated region
      $region25: #{tpu_custom_call.1} parent=5 // pred_check
        _
      $region26: #{tpu_custom_call.1} parent=5 // pred_check_branch
        %183 = sbr.rel (%p180) target = $region28
      $region27: #{tpu_custom_call.1} parent=5 // pred_region
        %s184 = ssub.s32 %s17, 1
        %s185 = sand.u32 %s48, 1
        %s186 = scalar_lea.sflag [#allocation4], %s185
        %s187 = sand.u32 %s48, 1
        %s188 = scalar_lea.vmem [#allocation3], %s187
        // Predicated region
        $region29: #{tpu_custom_call.1} parent=27 // pred_check
          %p189 = pneg %p61
        $region30: #{tpu_custom_call.1} parent=27 // pred_check_branch
          %191 = sbr.rel (%p189) target = $region32
        $region31: #{tpu_custom_call.1} parent=27 // pred_region
          %193 = dma.done %s186, 16
        $region32: #{tpu_custom_call.1} parent=27 // pred_fallthru
          _
        %s194 = sand.u32 %s80, 1
        %s195 = scalar_lea.sflag [#allocation7], %s194
        %s196 = sand.u32 %s80, 1
        %s197 = scalar_lea.vmem [#allocation6], %s196
        // Predicated region
        $region33: #{tpu_custom_call.1} parent=27 // pred_check
          %p198 = pneg %p93
        $region34: #{tpu_custom_call.1} parent=27 // pred_check_branch
          %200 = sbr.rel (%p198) target = $region36
        $region35: #{tpu_custom_call.1} parent=27 // pred_region
          %202 = dma.done %s195, 16
        $region36: #{tpu_custom_call.1} parent=27 // pred_fallthru
          _
        %s203 = sand.u32 %s48, 1
        %s204 = scalar_lea.sflag [#allocation4], %s203
        %s205 = sand.u32 %s48, 1
        %s206 = scalar_lea.vmem [#allocation3], %s205
        %p207 = pneg %p61
        %p208 = pneg %p58
        %s209 = sand.u32 %s80, 1
        %s210 = scalar_lea.sflag [#allocation7], %s209
        %s211 = sand.u32 %s80, 1
        %s212 = scalar_lea.vmem [#allocation6], %s211
        %p213 = pneg %p93
        %p214 = pneg %p90
        %p215 = pneg %p119
        %p216 = pneg %p116
        %s217 = sand.u32 %s106, 1
        %s218 = scalar_lea.sflag [#allocation5], %s217
        %s219 = sand.u32 %s106, 1
        %s220 = scalar_lea.vmem [#allocation8], %s219
        %s221 = sadd.s32 %s26, %s27
        %p222 = scmp.lt.s32.totalorder %s221, 0
        %s223 = scalar_select %p222, %s221, 0
        %s224 = sadd.s32 %s26, %s27
        %p225 = scmp.lt.s32.totalorder %s224, 0
        %s226 = scalar_select %p225, %s224, 0
        %p227 = scmp.eq.s32.totalorder %s27, 0
        // Predicated region
        $region37: #{tpu_custom_call.1} parent=27 // pred_check
          %p228 = pneg %p227
        $region38: #{tpu_custom_call.1} parent=27 // pred_check_branch
          %230 = sbr.rel (%p228) target = $region40
        $region39: #{tpu_custom_call.1} parent=27 // pred_region
          %vm231 = vcmask 57344
          %232 = vst.msk [vmem:[#allocation2] sm:$0x1] %vm231, 0.0
        $region40: #{tpu_custom_call.1} parent=27 // pred_fallthru
          _
        %v233 = vld [vmem:[%s188] sm:$0x1]
        %v234 = vld [vmem:[%s197] sm:$0x1]
        %v235 = vsub.f32 1.0, %v233
        %v236 = vmax.f32 %v235, 0.0
        %v237 = vsub.f32 1.0, %v234
        %v238 = vmul.f32 %v237, %v233
        %v239 = vmul.f32 %v238, %v233
        %v240 = vmul.f32 %v234, %v236
        %v241 = vmul.f32 %v240, %v236
        %v242 = vadd.f32 %v239, %v241
        %s243 = sadd.s32 %s26, %s27
        %s244 = smul.u32 %s243, 8
        %v245 = vlaneseq
        %v246 = vand.u32 %v245, 127
        %v247 = vstv %s244
        %v248 = vadd.s32 %v247, %v246
        %vm249 = vcmp.lt.s32.totalorder %v248, 8
        %v250 = vsel %vm249, %v242, 0.0
        %v251 = vld [vmem:[#allocation2] sm:$0x1]
        %v252 = vadd.f32 %v251, %v250
        %vm253 = vcmask 57344
        %254 = vst.msk [vmem:[#allocation2] sm:$0x1] %vm253, %v252
        // Predicated region
        $region41: #{tpu_custom_call.1} parent=27 // pred_check
          %p255 = pneg %p227
        $region42: #{tpu_custom_call.1} parent=27 // pred_check_branch
          %257 = sbr.rel (%p255) target = $region44
        $region43: #{tpu_custom_call.1} parent=27 // pred_region
          %v258 = vld [vmem:[#allocation2] sm:$0x1]
          %v259 = vsel %vm253, %v258, 0.0
          %260 = vadd.xlane.f32.xlu0 %v259
          %v261 = vpop.xlane.xlu0 %260
          %v262 = vmul.f32 %v261, 0.125
          %263 = vst [vmem:[%s220] sm:$0x1] %v262
        $region44: #{tpu_custom_call.1} parent=27 // pred_fallthru
          _
        %s264 = sand.u32 %s106, 1
        %s265 = scalar_lea.sflag [#allocation5], %s264
        %s266 = sand.u32 %s106, 1
        %s267 = scalar_lea.vmem [#allocation8], %s266
        // Predicated region
        $region45: #{tpu_custom_call.1} parent=27 // pred_check
          %p268 = pneg %p116
        $region46: #{tpu_custom_call.1} parent=27 // pred_check_branch
          %270 = sbr.rel (%p268) target = $region48
        $region47: #{tpu_custom_call.1} parent=27 // pred_region
          %272 = vsyncadd %s265, 0
          %s273 = scalar_lea.hbm %s2, %s26
          %s275 = sshll.u32 %s267, 4
          %s276 = int_to_ptr.vmem [resolvable:$true] %s275
          %s277 = sshll.u32 %s273, 4
          %s278 = int_to_ptr.hbm [resolvable:$true] %s277
          %280 = dma.vmem_to_hbm [thread:$0]  %s276, 16, %s278, %s265
        $region48: #{tpu_custom_call.1} parent=27 // pred_fallthru
          _
      $region28: #{tpu_custom_call.1} parent=5 // pred_fallthru
        _
      %p281 = scmp.le.s32.totalorder 2, %s17
      // Predicated region
      $region49: #{tpu_custom_call.1} parent=5 // pred_check
        %p282 = pneg %p281
      $region50: #{tpu_custom_call.1} parent=5 // pred_check_branch
        %284 = sbr.rel (%p282) target = $region52
      $region51: #{tpu_custom_call.1} parent=5 // pred_region
        %s285 = ssub.s32 %s17, 2
        // Predicated region
        $region53: #{tpu_custom_call.1} parent=51 // pred_check
          %p286 = pneg %p122
        $region54: #{tpu_custom_call.1} parent=51 // pred_check_branch
          %288 = sbr.rel (%p286) target = $region56
        $region55: #{tpu_custom_call.1} parent=51 // pred_region
          %s289 = sand.u32 %s107, 1
          %s290 = scalar_lea.sflag [#allocation5], %s289
          %s291 = sand.u32 %s107, 1
          %s292 = scalar_lea.vmem [#allocation8], %s291
          %294 = dma.done %s290, 16
        $region56: #{tpu_custom_call.1} parent=51 // pred_fallthru
          _
      $region52: #{tpu_custom_call.1} parent=5 // pred_fallthru
        _
    $region6: #{tpu_custom_call.1} parent=1 // loop_footer
      %s21 = sadd.s32 1, %s17
    $region7: #{tpu_custom_call.1} parent=1 // loop_footer_branch
      %16 = sbr.rel target = $region3
    $region8: #{tpu_custom_call.1} parent=1 // loop_exit
      _
    %295 = vsyncpa [#allocation4], 1
    %s296 = scalar_lea.sflag [#allocation4], 1
    %297 = vsyncpa %s296, 1
    %298 = vsyncpa [#allocation7], 1
    %s299 = scalar_lea.sflag [#allocation7], 1
    %300 = vsyncpa %s299, 1
    %301 = vsyncpa [#allocation5], 1
    %s302 = scalar_lea.sflag [#allocation5], 1
    %303 = vsyncpa %s302, 1

</llo_original>
